<compile_context>
chip_gen: v7x
topology: tpu7x:2x2x1
jax: 0.10.0
libtpu: 0.0.40
codegen_flags: <defaults>
</compile_context>

<pallas_src>
import functools
import math

import jax
import jax.numpy as jnp
from jax import lax
from jax.experimental import pallas as pl
from jax.experimental.pallas import tpu as pltpu


# --------------------- flash causal prompt attention kernel ---------------------

def _rep_lanes(x, width):
    """x: (tq, 128) lane-replicated f32 -> something broadcastable over `width` lanes."""
    if width == 128:
        return x
    if width % 128 == 0:
        return jnp.tile(x, (1, width // 128))
    return x[:, :1]


def _flash_prefill_kernel(qblk_ref, kblk_ref, q_ref, k_ref, v_ref, o_ref,
                          m_sc, l_sc, acc_sc, *,
                          scale, num_heads, num_kv_heads, head_size, tq, tk, nk):
    p = pl.program_id(1)
    qi = qblk_ref[p]          # q block index for this grid step
    ki = kblk_ref[p]          # kv block index for this grid step
    group = num_heads // num_kv_heads

    # First kv block of every q tile is always ki == 0 (triangular block list).
    @pl.when(ki == 0)
    def _():
        m_sc[...] = jnp.full_like(m_sc, -jnp.inf)
        l_sc[...] = jnp.zeros_like(l_sc)
        acc_sc[...] = jnp.zeros_like(acc_sc)

    q_start = qi * tq
    kv_start = ki * tk
    needs_mask = (kv_start + tk - 1) > q_start   # block touches / crosses the diagonal

    def process(visible):
        for kh in range(num_kv_heads):
            # K/V head tile shared by the whole GQA group (lane-aligned static slice).
            k_h = k_ref[0, :, kh * head_size:(kh + 1) * head_size]    # (tk, D) native dtype
            v_h = v_ref[0, :, kh * head_size:(kh + 1) * head_size]    # (tk, D)
            for g in range(group):
                h = kh * group + g
                q_h = q_ref[0, :, h * head_size:(h + 1) * head_size]  # (tq, D)
                # QK^T on the MXU, f32 accumulation, no upcast of the operands.
                s = lax.dot_general(q_h, k_h, (((1,), (1,)), ((), ())),
                                    preferred_element_type=jnp.float32) * scale
                if visible is not None:
                    s = jnp.where(visible, s, -jnp.inf)
                m_prev = m_sc[h]                                     # (tq, 128) lane-replicated
                m_cur = jnp.max(s, axis=-1, keepdims=True)           # (tq, 1)
                m_next = jnp.maximum(m_prev, m_cur)                  # (tq, 128)
                alpha = jnp.exp(m_prev - m_next)                     # (tq, 128)
                p_mat = jnp.exp(s - _rep_lanes(m_next, tk))          # (tq, tk) f32
                l_sc[h] = alpha * l_sc[h] + jnp.sum(p_mat, axis=-1, keepdims=True)
                acc_sc[h] = _rep_lanes(alpha, head_size) * acc_sc[h] + jnp.dot(
                    p_mat.astype(v_h.dtype), v_h, preferred_element_type=jnp.float32)
                m_sc[h] = m_next

    # Fully visible block (strictly below the diagonal): no mask work.
    @pl.when(jnp.logical_not(needs_mask))
    def _():
        process(None)

    # Diagonal block: apply the causal mask (iota built once per step, not per head).
    @pl.when(needs_mask)
    def _():
        row = q_start + lax.broadcasted_iota(jnp.int32, (tq, tk), 0)
        col = kv_start + lax.broadcasted_iota(jnp.int32, (tq, tk), 1)
        process(col <= row)

    # Last useful kv block for this q tile -> normalise and emit.
    last_k = jnp.minimum((q_start + tq - 1) // tk, nk - 1)

    @pl.when(ki == last_k)
    def _():
        for h in range(num_heads):
            inv_l = pl.reciprocal(l_sc[h], approx=True)              # (tq, 128)
            o_ref[0, :, h * head_size:(h + 1) * head_size] = (
                acc_sc[h] * _rep_lanes(inv_l, head_size)).astype(o_ref.dtype)


def flash_prompt_attention(q, k, v, *, scale, num_heads, num_kv_heads, head_size,
                           tq=128, tk=128):
    """Causal GQA prompt attention. q:[B,Sq,H*D], k/v:[B,Skv,Hkv*D] -> [B,Sq,H*D]."""
    B, S, hidden = q.shape
    _, S_kv, kv_hidden = k.shape
    assert hidden == num_heads * head_size
    assert kv_hidden == num_kv_heads * head_size
    assert num_heads % num_kv_heads == 0
    assert S % tq == 0 and S_kv % tk == 0
    assert tq % 8 == 0 and tk % 8 == 0
    nq, nk = S // tq, S_kv // tk

    # Static lower-triangular (q_blk, kv_blk) block list: fully-masked blocks are
    # simply never enumerated, so they cost neither DMA nor a grid step.
    pairs_q, pairs_k = [], []
    for qi in range(nq):
        kmax = min((qi * tq + tq - 1) // tk, nk - 1)
        for ki in range(kmax + 1):
            pairs_q.append(qi)
            pairs_k.append(ki)
    n_pairs = len(pairs_q)
    q_blk = jnp.asarray(pairs_q, dtype=jnp.int32)
    kv_blk = jnp.asarray(pairs_k, dtype=jnp.int32)

    kernel = functools.partial(
        _flash_prefill_kernel, scale=scale, num_heads=num_heads,
        num_kv_heads=num_kv_heads, head_size=head_size, tq=tq, tk=tk, nk=nk)

    def q_index_map(b, p, qb, kb):
        return (b, qb[p], 0)

    def kv_index_map(b, p, qb, kb):
        return (b, kb[p], 0)

    return pl.pallas_call(
        kernel,
        out_shape=jax.ShapeDtypeStruct((B, S, hidden), q.dtype),
        grid_spec=pltpu.PrefetchScalarGridSpec(
            num_scalar_prefetch=2,
            grid=(B, n_pairs),
            in_specs=[
                pl.BlockSpec((1, tq, hidden), q_index_map),
                pl.BlockSpec((1, tk, kv_hidden), kv_index_map),
                pl.BlockSpec((1, tk, kv_hidden), kv_index_map),
            ],
            out_specs=pl.BlockSpec((1, tq, hidden), q_index_map),
            scratch_shapes=[
                pltpu.VMEM((num_heads, tq, 128), jnp.float32),        # running max (lane-repl.)
                pltpu.VMEM((num_heads, tq, 128), jnp.float32),        # running denom (lane-repl.)
                pltpu.VMEM((num_heads, tq, head_size), jnp.float32),  # accumulator
            ]),
        compiler_params=pltpu.CompilerParams(
            dimension_semantics=("parallel", "arbitrary"),
            vmem_limit_bytes=32 * 1024 * 1024),
    )(q_blk, kv_blk, q, k, v)


# ------------------------- in-place KV cache insert ------------------------------

def _kv_cache_insert_kernel(bidx_ref, new_k_ref, new_v_ref, k_cache_hbm, v_cache_hbm,
                            k_out_ref, v_out_ref):
    # Cache outputs alias the cache inputs (in-place update); the aliased inputs are
    # never read (pl.ANY -> no HBM->VMEM DMA) — only visited blocks are written.
    del bidx_ref, k_cache_hbm, v_cache_hbm
    k_out_ref[...] = new_k_ref[...].astype(k_out_ref.dtype)
    v_out_ref[...] = new_v_ref[...].astype(v_out_ref.dtype)


def kv_cache_insert(key_cache, value_cache, key_blocks, value_blocks, block_indices):
    """In-place scatter of whole blocks: cache[block_indices[i]] = new_blocks[i].

    K and V are inserted in a single fused pallas_call."""
    n_blocks, block_size, h_kv, d = key_blocks.shape
    assert key_cache.shape[1:] == (block_size, h_kv, d)
    assert value_cache.shape == key_cache.shape
    blk = (1, block_size, h_kv, d)

    def src_map(i, bidx):
        return (i, 0, 0, 0)

    def dst_map(i, bidx):
        return (bidx[i], 0, 0, 0)

    return pl.pallas_call(
        _kv_cache_insert_kernel,
        out_shape=(jax.ShapeDtypeStruct(key_cache.shape, key_cache.dtype),
                   jax.ShapeDtypeStruct(value_cache.shape, value_cache.dtype)),
        grid_spec=pltpu.PrefetchScalarGridSpec(
            num_scalar_prefetch=1,
            grid=(n_blocks,),
            in_specs=[
                pl.BlockSpec(blk, src_map),              # new key blocks
                pl.BlockSpec(blk, src_map),              # new value blocks
                pl.BlockSpec(memory_space=pl.ANY),       # existing key cache (aliased, never read)
                pl.BlockSpec(memory_space=pl.ANY),       # existing value cache (aliased, never read)
            ],
            out_specs=(pl.BlockSpec(blk, dst_map),
                       pl.BlockSpec(blk, dst_map))),
        # inputs: 0 = block_indices (scalar prefetch), 1 = new_k, 2 = new_v,
        #         3 = key_cache, 4 = value_cache
        input_output_aliases={3: 0, 4: 1},
        compiler_params=pltpu.CompilerParams(
            dimension_semantics=("arbitrary",)),
    )(block_indices, key_blocks, value_blocks, key_cache, value_cache)


# ------------------------------ forward wrapper ----------------------------------

def hpu_attention_prefill_forward(query, key, value, kv_cache, block_indices, *,
                                  num_heads, num_kv_heads, head_size, scale,
                                  tq=128, tk=128):
    """Mirrors HPUAttentionImpl.forward with attn_metadata.is_prompt=True,
    attn_bias=None, alibi_slopes=None (plain causal prefill)."""
    B, S, hidden = query.shape
    _, S_kv, _ = key.shape
    assert hidden == num_heads * head_size

    key_cache, value_cache = kv_cache
    n_blocks = block_indices.shape[0]
    block_size = key_cache.shape[1]
    assert (B * S_kv) == n_blocks * block_size  # whole-block prefill insert

    # key.view(-1, Hkv, D).unflatten(0, (n_blocks, -1)) -> write whole blocks.
    key_blocks = key.reshape(n_blocks, block_size, num_kv_heads, head_size)
    value_blocks = value.reshape(n_blocks, block_size, num_kv_heads, head_size)
    key_cache, value_cache = kv_cache_insert(
        key_cache, value_cache, key_blocks, value_blocks, block_indices)

    # ops.prompt_attention(..., is_causal=True) — flash-tiled Pallas kernel.
    out = flash_prompt_attention(
        query, key, value, scale=scale, num_heads=num_heads,
        num_kv_heads=num_kv_heads, head_size=head_size, tq=tq, tk=tk)
    return out.reshape(B, S, hidden), (key_cache, value_cache)


# ------------------------------ reference (checks) --------------------------------

def _reference_prompt_attention(q, k, v, scale, num_heads, num_kv_heads, head_size):
    B, S, _ = q.shape
    _, S_kv, _ = k.shape
    group = num_heads // num_kv_heads
    qh = q.reshape(B, S, num_heads, head_size).astype(jnp.float32)
    kh = jnp.repeat(k.reshape(B, S_kv, num_kv_heads, head_size).astype(jnp.float32),
                    group, axis=2)
    vh = jnp.repeat(v.reshape(B, S_kv, num_kv_heads, head_size).astype(jnp.float32),
                    group, axis=2)
    s = jnp.einsum("bqhd,bkhd->bhqk", qh, kh) * scale
    mask = jnp.tril(jnp.ones((S, S_kv), dtype=bool))
    s = jnp.where(mask[None, None], s, -jnp.inf)
    p = jax.nn.softmax(s, axis=-1)
    o = jnp.einsum("bhqk,bkhd->bqhd", p, vh)
    return o.reshape(B, S, num_heads * head_size)


# --------------------------------- main --------------------------------------------

if __name__ == "__main__":
    B, S = 2, 256
    num_heads, num_kv_heads, head_size = 4, 2, 128
    hidden = num_heads * head_size
    kv_hidden = num_kv_heads * head_size
    scale = 1.0 / math.sqrt(head_size)
    dtype = jnp.bfloat16
    tq = tk = 128

    block_size = 64
    num_blocks_total = 16
    n_prefill_blocks = (B * S) // block_size                          # 8
    block_indices = jnp.array([1, 3, 5, 7, 9, 11, 13, 15], dtype=jnp.int32)

    rng = jax.random.PRNGKey(0)
    rq, rk, rv = jax.random.split(rng, 3)
    query = jax.random.normal(rq, (B, S, hidden), jnp.float32).astype(dtype)
    key_t = jax.random.normal(rk, (B, S, kv_hidden), jnp.float32).astype(dtype)
    value_t = jax.random.normal(rv, (B, S, kv_hidden), jnp.float32).astype(dtype)

    key_cache = jnp.zeros((num_blocks_total, block_size, num_kv_heads, head_size), dtype)
    value_cache = jnp.zeros_like(key_cache)

    out, (new_k_cache, new_v_cache) = hpu_attention_prefill_forward(
        query, key_t, value_t, (key_cache, value_cache), block_indices,
        num_heads=num_heads, num_kv_heads=num_kv_heads, head_size=head_size,
        scale=scale, tq=tq, tk=tk)

    out = jax.block_until_ready(out)
    new_k_cache = jax.block_until_ready(new_k_cache)
    new_v_cache = jax.block_until_ready(new_v_cache)

    # --- correctness checks ---
    assert out.shape == (B, S, hidden)
    ref = _reference_prompt_attention(query, key_t, value_t, scale,
                                      num_heads, num_kv_heads, head_size)
    err = float(jnp.max(jnp.abs(out.astype(jnp.float32) - ref)))
    assert err < 4e-2, f"attention mismatch: max abs err {err}"
    assert bool(jnp.all(jnp.isfinite(out.astype(jnp.float32))))

    key_blocks = key_t.reshape(n_prefill_blocks, block_size, num_kv_heads, head_size)
    val_blocks = value_t.reshape(n_prefill_blocks, block_size, num_kv_heads, head_size)
    exp_k = jnp.zeros((num_blocks_total, block_size, num_kv_heads, head_size),
                      dtype).at[block_indices].set(key_blocks)
    exp_v = jnp.zeros((num_blocks_total, block_size, num_kv_heads, head_size),
                      dtype).at[block_indices].set(val_blocks)
    assert bool(jnp.array_equal(new_k_cache, exp_k))
    assert bool(jnp.array_equal(new_v_cache, exp_v))

    print("KERNEL_OK")
</pallas_src>

<mosaic_0001>
module attributes {stable_mosaic.version = 11 : i64} {
  func.func @_kv_cache_insert_kernel(%arg0: i32, %arg1: memref<8xi32, #tpu.memory_space<smem>>, %arg2: memref<1x64x2x128xbf16, #tpu.memory_space<vmem>>, %arg3: memref<1x64x2x128xbf16, #tpu.memory_space<vmem>>, %arg4: memref<16x64x2x128xbf16, #tpu.memory_space<any>>, %arg5: memref<16x64x2x128xbf16, #tpu.memory_space<any>>, %arg6: memref<1x64x2x128xbf16, #tpu.memory_space<vmem>>, %arg7: memref<1x64x2x128xbf16, #tpu.memory_space<vmem>>) attributes {dimension_semantics = [#tpu.dimension_semantics<arbitrary>], iteration_bounds = array<i64: 8>, scalar_prefetch = 1 : i64, scratch_operands = 0 : i64, tpu.core_type = #tpu.core_type<tc>, window_params = [{transform_indices = @transform_0, window_bounds = array<i64: 1, 64, 2, 128>}, {transform_indices = @transform_1, window_bounds = array<i64: 1, 64, 2, 128>}, {}, {}, {transform_indices = @transform_4, window_bounds = array<i64: 1, 64, 2, 128>}, {transform_indices = @transform_5, window_bounds = array<i64: 1, 64, 2, 128>}]} {
    %c0 = arith.constant 0 : index
    %c0_0 = arith.constant 0 : index
    %c0_1 = arith.constant 0 : index
    %c0_2 = arith.constant 0 : index
    %0 = vector.load %arg2[%c0, %c0_0, %c0_1, %c0_2] : memref<1x64x2x128xbf16, #tpu.memory_space<vmem>>, vector<1x64x2x128xbf16>
    %c0_3 = arith.constant 0 : index
    %c0_4 = arith.constant 0 : index
    %c0_5 = arith.constant 0 : index
    %c0_6 = arith.constant 0 : index
    %1 = vector.load %arg6[%c0_3, %c0_4, %c0_5, %c0_6] : memref<1x64x2x128xbf16, #tpu.memory_space<vmem>>, vector<1x64x2x128xbf16>
    tpu.vector_store %arg6[%c0_3, %c0_4, %c0_5, %c0_6], %0 {strides = array<i32>} : memref<1x64x2x128xbf16, #tpu.memory_space<vmem>>, vector<1x64x2x128xbf16>,
    %c0_7 = arith.constant 0 : index
    %c0_8 = arith.constant 0 : index
    %c0_9 = arith.constant 0 : index
    %c0_10 = arith.constant 0 : index
    %2 = vector.load %arg3[%c0_7, %c0_8, %c0_9, %c0_10] : memref<1x64x2x128xbf16, #tpu.memory_space<vmem>>, vector<1x64x2x128xbf16>
    %c0_11 = arith.constant 0 : index
    %c0_12 = arith.constant 0 : index
    %c0_13 = arith.constant 0 : index
    %c0_14 = arith.constant 0 : index
    %3 = vector.load %arg7[%c0_11, %c0_12, %c0_13, %c0_14] : memref<1x64x2x128xbf16, #tpu.memory_space<vmem>>, vector<1x64x2x128xbf16>
    tpu.vector_store %arg7[%c0_11, %c0_12, %c0_13, %c0_14], %2 {strides = array<i32>} : memref<1x64x2x128xbf16, #tpu.memory_space<vmem>>, vector<1x64x2x128xbf16>,
    return
  }
  func.func @transform_0(%arg0: i32, %arg1: memref<8xi32, #tpu.memory_space<smem>>) -> (i32, i32, i32, i32) {
    %c0_i32 = arith.constant 0 : i32
    %c0_i32_0 = arith.constant 0 : i32
    %c0_i32_1 = arith.constant 0 : i32
    %c0_i32_2 = arith.constant 0 : i32
    return %arg0, %c0_i32, %c0_i32_0, %c0_i32_1 : i32, i32, i32, i32
  }
  func.func @transform_1(%arg0: i32, %arg1: memref<8xi32, #tpu.memory_space<smem>>) -> (i32, i32, i32, i32) {
    %c0_i32 = arith.constant 0 : i32
    %c0_i32_0 = arith.constant 0 : i32
    %c0_i32_1 = arith.constant 0 : i32
    %c0_i32_2 = arith.constant 0 : i32
    return %arg0, %c0_i32, %c0_i32_0, %c0_i32_1 : i32, i32, i32, i32
  }
  func.func @transform_4(%arg0: i32, %arg1: memref<8xi32, #tpu.memory_space<smem>>) -> (i32, i32, i32, i32) {
    %0 = arith.index_cast %arg0 : i32 to index
    %1 = memref.load %arg1[%0] : memref<8xi32, #tpu.memory_space<smem>>
    %c0_i32 = arith.constant 0 : i32
    %c0_i32_0 = arith.constant 0 : i32
    %c0_i32_1 = arith.constant 0 : i32
    %c0_i32_2 = arith.constant 0 : i32
    return %1, %c0_i32, %c0_i32_0, %c0_i32_1 : i32, i32, i32, i32
  }
  func.func @transform_5(%arg0: i32, %arg1: memref<8xi32, #tpu.memory_space<smem>>) -> (i32, i32, i32, i32) {
    %0 = arith.index_cast %arg0 : i32 to index
    %1 = memref.load %arg1[%0] : memref<8xi32, #tpu.memory_space<smem>>
    %c0_i32 = arith.constant 0 : i32
    %c0_i32_0 = arith.constant 0 : i32
    %c0_i32_1 = arith.constant 0 : i32
    %c0_i32_2 = arith.constant 0 : i32
    return %1, %c0_i32, %c0_i32_0, %c0_i32_1 : i32, i32, i32, i32
  }
}

</mosaic_0001>

<llo_original>
// kernel: tpu_custom_call.1
$region0: #{tpu_custom_call.1}
  #allocation0 [shape = 'u32[]', space=smem, size = 0x4, offset = 0x4, fixed_abs, tag = 'smem constant byte address 0x4 - core index']
  #allocation1 [shape = 'u32[144,128]{1,0:T(1,128)}', space=vmem, size = 0x12000, scoped, tag = 'internal scratch']
  #allocation2 [shape = 's32[1]{0}', space=sflag, size = 0x4, scoped, tag = 'scoped memory for tpu_custom_call.1']
  #allocation3 [shape = 'u8[512]{0}', space=smem, size = 0x200, scoped, tag = 'prefetched SMEM operand 0']
  %s0 = inlined_call_operand.vmem [shape: s32[8], index: 0, kind: input, shape index: {}]
  %s1 = inlined_call_operand.vmem [shape: bf16[8,64,2,128], index: 1, kind: input, shape index: {}]
  %s2 = inlined_call_operand.vmem [shape: bf16[8,64,2,128], index: 2, kind: input, shape index: {}]
  %s3 = inlined_call_operand.hbm [shape: bf16[16,64,2,128], index: 3, kind: input, shape index: {}, may-alias: {3,5}]
  %s4 = inlined_call_operand.hbm [shape: bf16[16,64,2,128], index: 4, kind: input, shape index: {}, may-alias: {4,6}]
  %s5 = inlined_call_operand.hbm [shape: bf16[16,64,2,128], index: 5, kind: output, shape index: {0}, may-alias: {3,5}]
  %s6 = inlined_call_operand.hbm [shape: bf16[16,64,2,128], index: 6, kind: output, shape index: {1}, may-alias: {4,6}]
  %7 = xla_tuple %s5, %s6
  %s8 = sld [smem:[#allocation0]]
  $region49: #{tpu_custom_call.1} parent=0
    _
  %s10 = ssub.s32 1, %s8
  %s11 = scalar_select 0, %s10, %s8
  %s12 = sshll.u32 %s0, 4
  %s13 = int_to_ptr.vmem [resolvable:$true] %s12
  %15 = dma.vmem_to_smem %s13, 16, [#allocation3], [#allocation2]
  %16 = dma.done [#allocation2], 16
  %17 = sfence
  $region1: #{tpu_custom_call.1} parent=0
    #allocation4 [shape = 'u8[65536]{0}', space=vmem, size = 0x10000, scoped, tag = 'output window, operand 0']
    #allocation5 [shape = 's32[2]{0}', space=sflag, size = 0x8, scoped, tag = 'scoped memory for tpu_custom_call.1']
    #allocation6 [shape = 'u8[65536]{0}', space=vmem, size = 0x10000, scoped, tag = 'output window, operand 1']
    #allocation7 [shape = 's32[2]{0}', space=sflag, size = 0x8, scoped, tag = 'scoped memory for tpu_custom_call.1']
    %18 = vsyncpa [#allocation5], 0
    %s19 = scalar_lea.sflag [#allocation5], 1
    %20 = vsyncpa %s19, 0
    %21 = vsyncpa [#allocation7], 0
    %s22 = scalar_lea.sflag [#allocation7], 1
    %23 = vsyncpa %s22, 0
    loop: start=0, step=1, limit=10
    $region2: #{tpu_custom_call.1} parent=1 // loop_pre_header
      _
    $region3: #{tpu_custom_call.1} parent=1 // loop_header
      %s25 = sphi 0, %s29
      %p26 = scmp.ge.s32.totalorder %s25, 10
      %s35 = sphi 0, %s37
      %s38 = sphi 0, %s35
      %s39 = sphi 0, %s38
      %s55 = sphi 0, %s39
      %s61 = sphi 0, %s63
      %s64 = sphi 0, %s61
      %s65 = sphi 0, %s64
      %s81 = sphi 0, %s65
      %s89 = sphi 0, %s91
      %s92 = sphi 0, %s89
      %s93 = sphi 0, %s92
      %s109 = sphi 0, %s93
      %s117 = sphi 0, %s119
      %s120 = sphi 0, %s117
      %s121 = sphi 0, %s120
      %s137 = sphi 0, %s121
    $region4: #{tpu_custom_call.1} parent=1 // loop_header_branch
      %28 = sbr.rel (%p26) target = $region8
    $region5: #{tpu_custom_call.1} parent=1 // loop_body
      %s30 = ssub.s32 %s25, 1
      %s31 = ssub.s32 %s25, 2
      %s32 = sadd.s32 %s25, 1
      %s33 = ssub.s32 %s25, %s32
      %p34 = scmp.eq.s32.totalorder %s33, 0
      %s36 = sadd.s32 %s35, 1
      %s37 = scalar_select %p34, %s35, %s36
      %p40 = pneg %p34
      %p41 = scmp.eq.s32.totalorder %s25, 7
      %p42 = por %p40, %p41
      %p43 = scmp.ne.s32.totalorder %s35, %s38
      %p44 = scmp.eq.s32.totalorder %s25, 0
      %p45 = por %p43, %p44
      %p46 = scmp.ne.s32.totalorder %s35, %s38
      %p47 = scmp.eq.s32.totalorder %s30, 7
      %p48 = por %p46, %p47
      %p49 = scmp.ne.s32.totalorder %s38, %s39
      %p50 = scmp.eq.s32.totalorder %s30, 0
      %p51 = por %p49, %p50
      %p52 = scmp.ne.s32.totalorder %s38, %s39
      %p53 = scmp.eq.s32.totalorder %s31, 7
      %p54 = por %p52, %p53
      %p56 = scmp.ne.s32.totalorder %s39, %s55
      %p57 = scmp.eq.s32.totalorder %s31, 0
      %p58 = por %p56, %p57
      %s59 = ssub.s32 %s25, %s32
      %p60 = scmp.eq.s32.totalorder %s59, 0
      %s62 = sadd.s32 %s61, 1
      %s63 = scalar_select %p60, %s61, %s62
      %p66 = pneg %p60
      %p67 = scmp.eq.s32.totalorder %s25, 7
      %p68 = por %p66, %p67
      %p69 = scmp.ne.s32.totalorder %s61, %s64
      %p70 = scmp.eq.s32.totalorder %s25, 0
      %p71 = por %p69, %p70
      %p72 = scmp.ne.s32.totalorder %s61, %s64
      %p73 = scmp.eq.s32.totalorder %s30, 7
      %p74 = por %p72, %p73
      %p75 = scmp.ne.s32.totalorder %s64, %s65
      %p76 = scmp.eq.s32.totalorder %s30, 0
      %p77 = por %p75, %p76
      %p78 = scmp.ne.s32.totalorder %s64, %s65
      %p79 = scmp.eq.s32.totalorder %s31, 7
      %p80 = por %p78, %p79
      %p82 = scmp.ne.s32.totalorder %s65, %s81
      %p83 = scmp.eq.s32.totalorder %s31, 0
      %p84 = por %p82, %p83
      %s85 = sld [smem:[#allocation3 + %s25]]
      %s86 = sld [smem:[#allocation3 + %s32]]
      %s87 = ssub.s32 %s85, %s86
      %p88 = scmp.eq.s32.totalorder %s87, 0
      %s90 = sadd.s32 %s89, 1
      %s91 = scalar_select %p88, %s89, %s90
      %p94 = pneg %p88
      %p95 = scmp.eq.s32.totalorder %s25, 7
      %p96 = por %p94, %p95
      %p97 = scmp.ne.s32.totalorder %s89, %s92
      %p98 = scmp.eq.s32.totalorder %s25, 0
      %p99 = por %p97, %p98
      %p100 = scmp.ne.s32.totalorder %s89, %s92
      %p101 = scmp.eq.s32.totalorder %s30, 7
      %p102 = por %p100, %p101
      %p103 = scmp.ne.s32.totalorder %s92, %s93
      %p104 = scmp.eq.s32.totalorder %s30, 0
      %p105 = por %p103, %p104
      %p106 = scmp.ne.s32.totalorder %s92, %s93
      %p107 = scmp.eq.s32.totalorder %s31, 7
      %p108 = por %p106, %p107
      %p110 = scmp.ne.s32.totalorder %s93, %s109
      %p111 = scmp.eq.s32.totalorder %s31, 0
      %p112 = por %p110, %p111
      %s113 = sld [smem:[#allocation3 + %s25]]
      %s114 = sld [smem:[#allocation3 + %s32]]
      %s115 = ssub.s32 %s113, %s114
      %p116 = scmp.eq.s32.totalorder %s115, 0
      %s118 = sadd.s32 %s117, 1
      %s119 = scalar_select %p116, %s117, %s118
      %p122 = pneg %p116
      %p123 = scmp.eq.s32.totalorder %s25, 7
      %p124 = por %p122, %p123
      %p125 = scmp.ne.s32.totalorder %s117, %s120
      %p126 = scmp.eq.s32.totalorder %s25, 0
      %p127 = por %p125, %p126
      %p128 = scmp.ne.s32.totalorder %s117, %s120
      %p129 = scmp.eq.s32.totalorder %s30, 7
      %p130 = por %p128, %p129
      %p131 = scmp.ne.s32.totalorder %s120, %s121
      %p132 = scmp.eq.s32.totalorder %s30, 0
      %p133 = por %p131, %p132
      %p134 = scmp.ne.s32.totalorder %s120, %s121
      %p135 = scmp.eq.s32.totalorder %s31, 7
      %p136 = por %p134, %p135
      %p138 = scmp.ne.s32.totalorder %s121, %s137
      %p139 = scmp.eq.s32.totalorder %s31, 0
      %p140 = por %p138, %p139
      %p141 = scmp.le.s32.totalorder 1, %s25
      %p142 = scmp.lt.s32.totalorder %s25, 9
      %p143 = pnand %p141, %p142
      %p144 = pneg %p143
      // Predicated region
      $region9: #{tpu_custom_call.1} parent=5 // pred_check
        _
      $region10: #{tpu_custom_call.1} parent=5 // pred_check_branch
        %146 = sbr.rel (%p143) target = $region12
      $region11: #{tpu_custom_call.1} parent=5 // pred_region
        %s147 = ssub.s32 %s25, 1
      $region12: #{tpu_custom_call.1} parent=5 // pred_fallthru
        _
      %p148 = scmp.lt.s32.totalorder %s25, 8
      // Predicated region
      $region13: #{tpu_custom_call.1} parent=5 // pred_check
        %p149 = pneg %p148
      $region14: #{tpu_custom_call.1} parent=5 // pred_check_branch
        %151 = sbr.rel (%p149) target = $region16
      $region15: #{tpu_custom_call.1} parent=5 // pred_region
        // Predicated region
        $region17: #{tpu_custom_call.1} parent=15 // pred_check
          %p152 = pneg %p45
        $region18: #{tpu_custom_call.1} parent=15 // pred_check_branch
          %154 = sbr.rel (%p152) target = $region20
        $region19: #{tpu_custom_call.1} parent=15 // pred_region
          %p155 = scmp.lt.s32.totalorder %s25, 7
          %s156 = scalar_select %p155, %s25, 7
          %s157 = smul.addr %s156, 64
          %s158 = scalar_lea.vmem %s1, %s157
        $region20: #{tpu_custom_call.1} parent=15 // pred_fallthru
          _
        // Predicated region
        $region21: #{tpu_custom_call.1} parent=15 // pred_check
          %p159 = pneg %p71
        $region22: #{tpu_custom_call.1} parent=15 // pred_check_branch
          %161 = sbr.rel (%p159) target = $region24
        $region23: #{tpu_custom_call.1} parent=15 // pred_region
          %p162 = scmp.lt.s32.totalorder %s25, 7
          %s163 = scalar_select %p162, %s25, 7
          %s164 = smul.addr %s163, 64
          %s165 = scalar_lea.vmem %s2, %s164
        $region24: #{tpu_custom_call.1} parent=15 // pred_fallthru
          _
      $region16: #{tpu_custom_call.1} parent=5 // pred_fallthru
        _
      %p166 = scmp.le.s32.totalorder 1, %s25
      %p167 = scmp.lt.s32.totalorder %s25, 9
      %p168 = pnand %p166, %p167
      %p169 = pneg %p168
      // Predicated region
      $region25: #{tpu_custom_call.1} parent=5 // pred_check
        _
      $region26: #{tpu_custom_call.1} parent=5 // pred_check_branch
        %171 = sbr.rel (%p168) target = $region28
      $region27: #{tpu_custom_call.1} parent=5 // pred_region
        %s172 = ssub.s32 %s25, 1
        %p173 = scmp.lt.s32.totalorder %s30, 7
        %s174 = scalar_select %p173, %s30, 7
        %s175 = smul.addr %s174, 64
        %s176 = scalar_lea.vmem %s1, %s175
        %p177 = pneg %p51
        %p178 = pneg %p48
        %p179 = scmp.lt.s32.totalorder %s30, 7
        %s180 = scalar_select %p179, %s30, 7
        %s181 = smul.addr %s180, 64
        %s182 = scalar_lea.vmem %s2, %s181
        %p183 = pneg %p77
        %p184 = pneg %p74
        %p185 = pneg %p105
        %p186 = pneg %p102
        %s187 = sand.u32 %s92, 1
        %s188 = scalar_lea.sflag [#allocation5], %s187
        %s189 = sand.u32 %s92, 1
        %s190 = smul.addr %s189, 64
        %s191 = scalar_lea.vmem [#allocation4], %s190
        %p192 = pneg %p133
        %p193 = pneg %p130
        %s194 = sand.u32 %s120, 1
        %s195 = scalar_lea.sflag [#allocation7], %s194
        %s196 = sand.u32 %s120, 1
        %s197 = smul.addr %s196, 64
        %s198 = scalar_lea.vmem [#allocation6], %s197
        %p199 = scmp.lt.s32.totalorder %s30, 7
        %s200 = scalar_select %p199, %s30, 7
        %s201 = smul.addr %s200, 64
        %s202 = scalar_lea.vmem %s1, %s201
        %p203 = scmp.lt.s32.totalorder %s30, 7
        %s204 = scalar_select %p203, %s30, 7
        %s205 = smul.addr %s204, 64
        %s206 = scalar_lea.vmem %s2, %s205
        %s207 = sld [smem:[#allocation3 + %s30]]
        %s208 = sld [smem:[#allocation3 + %s30]]
        %v209 = vld [vmem:[%s202] sm:$0x1]
        %v210 = vld [vmem:[%s202 + $0x1] sm:$0x1]
        %v211 = vld [vmem:[%s202 + $0x2] sm:$0x1]
        %v212 = vld [vmem:[%s202 + $0x3] sm:$0x1]
        %v213 = vld [vmem:[%s202 + $0x4] sm:$0x1]
        %v214 = vld [vmem:[%s202 + $0x5] sm:$0x1]
        %v215 = vld [vmem:[%s202 + $0x6] sm:$0x1]
        %v216 = vld [vmem:[%s202 + $0x7] sm:$0x1]
        %v217 = vld [vmem:[%s202 + $0x8] sm:$0x1]
        %v218 = vld [vmem:[%s202 + $0x9] sm:$0x1]
        %v219 = vld [vmem:[%s202 + $0xa] sm:$0x1]
        %v220 = vld [vmem:[%s202 + $0xb] sm:$0x1]
        %v221 = vld [vmem:[%s202 + $0xc] sm:$0x1]
        %v222 = vld [vmem:[%s202 + $0xd] sm:$0x1]
        %v223 = vld [vmem:[%s202 + $0xe] sm:$0x1]
        %v224 = vld [vmem:[%s202 + $0xf] sm:$0x1]
        %v225 = vld [vmem:[%s202 + $0x10] sm:$0x1]
        %v226 = vld [vmem:[%s202 + $0x11] sm:$0x1]
        %v227 = vld [vmem:[%s202 + $0x12] sm:$0x1]
        %v228 = vld [vmem:[%s202 + $0x13] sm:$0x1]
        %v229 = vld [vmem:[%s202 + $0x14] sm:$0x1]
        %v230 = vld [vmem:[%s202 + $0x15] sm:$0x1]
        %v231 = vld [vmem:[%s202 + $0x16] sm:$0x1]
        %v232 = vld [vmem:[%s202 + $0x17] sm:$0x1]
        %v233 = vld [vmem:[%s202 + $0x18] sm:$0x1]
        %v234 = vld [vmem:[%s202 + $0x19] sm:$0x1]
        %v235 = vld [vmem:[%s202 + $0x1a] sm:$0x1]
        %v236 = vld [vmem:[%s202 + $0x1b] sm:$0x1]
        %v237 = vld [vmem:[%s202 + $0x1c] sm:$0x1]
        %v238 = vld [vmem:[%s202 + $0x1d] sm:$0x1]
        %v239 = vld [vmem:[%s202 + $0x1e] sm:$0x1]
        %v240 = vld [vmem:[%s202 + $0x1f] sm:$0x1]
        %v241 = vld [vmem:[%s202 + $0x20] sm:$0x1]
        %v242 = vld [vmem:[%s202 + $0x21] sm:$0x1]
        %v243 = vld [vmem:[%s202 + $0x22] sm:$0x1]
        %v244 = vld [vmem:[%s202 + $0x23] sm:$0x1]
        %v245 = vld [vmem:[%s202 + $0x24] sm:$0x1]
        %v246 = vld [vmem:[%s202 + $0x25] sm:$0x1]
        %v247 = vld [vmem:[%s202 + $0x26] sm:$0x1]
        %v248 = vld [vmem:[%s202 + $0x27] sm:$0x1]
        %v249 = vld [vmem:[%s202 + $0x28] sm:$0x1]
        %v250 = vld [vmem:[%s202 + $0x29] sm:$0x1]
        %v251 = vld [vmem:[%s202 + $0x2a] sm:$0x1]
        %v252 = vld [vmem:[%s202 + $0x2b] sm:$0x1]
        %v253 = vld [vmem:[%s202 + $0x2c] sm:$0x1]
        %v254 = vld [vmem:[%s202 + $0x2d] sm:$0x1]
        %v255 = vld [vmem:[%s202 + $0x2e] sm:$0x1]
        %v256 = vld [vmem:[%s202 + $0x2f] sm:$0x1]
        %v257 = vld [vmem:[%s202 + $0x30] sm:$0x1]
        %v258 = vld [vmem:[%s202 + $0x31] sm:$0x1]
        %v259 = vld [vmem:[%s202 + $0x32] sm:$0x1]
        %v260 = vld [vmem:[%s202 + $0x33] sm:$0x1]
        %v261 = vld [vmem:[%s202 + $0x34] sm:$0x1]
        %v262 = vld [vmem:[%s202 + $0x35] sm:$0x1]
        %v263 = vld [vmem:[%s202 + $0x36] sm:$0x1]
        %v264 = vld [vmem:[%s202 + $0x37] sm:$0x1]
        %v265 = vld [vmem:[%s202 + $0x38] sm:$0x1]
        %v266 = vld [vmem:[%s202 + $0x39] sm:$0x1]
        %v267 = vld [vmem:[%s202 + $0x3a] sm:$0x1]
        %v268 = vld [vmem:[%s202 + $0x3b] sm:$0x1]
        %v269 = vld [vmem:[%s202 + $0x3c] sm:$0x1]
        %v270 = vld [vmem:[%s202 + $0x3d] sm:$0x1]
        %v271 = vld [vmem:[%s202 + $0x3e] sm:$0x1]
        %v272 = vld [vmem:[%s202 + $0x3f] sm:$0x1]
        %273 = vst [vmem:[%s191] sm:$0x1] %v209
        %274 = vst [vmem:[%s191 + $0x1] sm:$0x1] %v210
        %275 = vst [vmem:[%s191 + $0x2] sm:$0x1] %v211
        %276 = vst [vmem:[%s191 + $0x3] sm:$0x1] %v212
        %277 = vst [vmem:[%s191 + $0x4] sm:$0x1] %v213
        %278 = vst [vmem:[%s191 + $0x5] sm:$0x1] %v214
        %279 = vst [vmem:[%s191 + $0x6] sm:$0x1] %v215
        %280 = vst [vmem:[%s191 + $0x7] sm:$0x1] %v216
        %281 = vst [vmem:[%s191 + $0x8] sm:$0x1] %v217
        %282 = vst [vmem:[%s191 + $0x9] sm:$0x1] %v218
        %283 = vst [vmem:[%s191 + $0xa] sm:$0x1] %v219
        %284 = vst [vmem:[%s191 + $0xb] sm:$0x1] %v220
        %285 = vst [vmem:[%s191 + $0xc] sm:$0x1] %v221
        %286 = vst [vmem:[%s191 + $0xd] sm:$0x1] %v222
        %287 = vst [vmem:[%s191 + $0xe] sm:$0x1] %v223
        %288 = vst [vmem:[%s191 + $0xf] sm:$0x1] %v224
        %289 = vst [vmem:[%s191 + $0x10] sm:$0x1] %v225
        %290 = vst [vmem:[%s191 + $0x11] sm:$0x1] %v226
        %291 = vst [vmem:[%s191 + $0x12] sm:$0x1] %v227
        %292 = vst [vmem:[%s191 + $0x13] sm:$0x1] %v228
        %293 = vst [vmem:[%s191 + $0x14] sm:$0x1] %v229
        %294 = vst [vmem:[%s191 + $0x15] sm:$0x1] %v230
        %295 = vst [vmem:[%s191 + $0x16] sm:$0x1] %v231
        %296 = vst [vmem:[%s191 + $0x17] sm:$0x1] %v232
        %297 = vst [vmem:[%s191 + $0x18] sm:$0x1] %v233
        %298 = vst [vmem:[%s191 + $0x19] sm:$0x1] %v234
        %299 = vst [vmem:[%s191 + $0x1a] sm:$0x1] %v235
        %300 = vst [vmem:[%s191 + $0x1b] sm:$0x1] %v236
        %301 = vst [vmem:[%s191 + $0x1c] sm:$0x1] %v237
        %302 = vst [vmem:[%s191 + $0x1d] sm:$0x1] %v238
        %303 = vst [vmem:[%s191 + $0x1e] sm:$0x1] %v239
        %304 = vst [vmem:[%s191 + $0x1f] sm:$0x1] %v240
        %305 = vst [vmem:[%s191 + $0x20] sm:$0x1] %v241
        %306 = vst [vmem:[%s191 + $0x21] sm:$0x1] %v242
        %307 = vst [vmem:[%s191 + $0x22] sm:$0x1] %v243
        %308 = vst [vmem:[%s191 + $0x23] sm:$0x1] %v244
        %309 = vst [vmem:[%s191 + $0x24] sm:$0x1] %v245
        %310 = vst [vmem:[%s191 + $0x25] sm:$0x1] %v246
        %311 = vst [vmem:[%s191 + $0x26] sm:$0x1] %v247
        %312 = vst [vmem:[%s191 + $0x27] sm:$0x1] %v248
        %313 = vst [vmem:[%s191 + $0x28] sm:$0x1] %v249
        %314 = vst [vmem:[%s191 + $0x29] sm:$0x1] %v250
        %315 = vst [vmem:[%s191 + $0x2a] sm:$0x1] %v251
        %316 = vst [vmem:[%s191 + $0x2b] sm:$0x1] %v252
        %317 = vst [vmem:[%s191 + $0x2c] sm:$0x1] %v253
        %318 = vst [vmem:[%s191 + $0x2d] sm:$0x1] %v254
        %319 = vst [vmem:[%s191 + $0x2e] sm:$0x1] %v255
        %320 = vst [vmem:[%s191 + $0x2f] sm:$0x1] %v256
        %321 = vst [vmem:[%s191 + $0x30] sm:$0x1] %v257
        %322 = vst [vmem:[%s191 + $0x31] sm:$0x1] %v258
        %323 = vst [vmem:[%s191 + $0x32] sm:$0x1] %v259
        %324 = vst [vmem:[%s191 + $0x33] sm:$0x1] %v260
        %325 = vst [vmem:[%s191 + $0x34] sm:$0x1] %v261
        %326 = vst [vmem:[%s191 + $0x35] sm:$0x1] %v262
        %327 = vst [vmem:[%s191 + $0x36] sm:$0x1] %v263
        %328 = vst [vmem:[%s191 + $0x37] sm:$0x1] %v264
        %329 = vst [vmem:[%s191 + $0x38] sm:$0x1] %v265
        %330 = vst [vmem:[%s191 + $0x39] sm:$0x1] %v266
        %331 = vst [vmem:[%s191 + $0x3a] sm:$0x1] %v267
        %332 = vst [vmem:[%s191 + $0x3b] sm:$0x1] %v268
        %333 = vst [vmem:[%s191 + $0x3c] sm:$0x1] %v269
        %334 = vst [vmem:[%s191 + $0x3d] sm:$0x1] %v270
        %335 = vst [vmem:[%s191 + $0x3e] sm:$0x1] %v271
        %336 = vst [vmem:[%s191 + $0x3f] sm:$0x1] %v272
        %v337 = vld [vmem:[%s206] sm:$0x1]
        %v338 = vld [vmem:[%s206 + $0x1] sm:$0x1]
        %v339 = vld [vmem:[%s206 + $0x2] sm:$0x1]
        %v340 = vld [vmem:[%s206 + $0x3] sm:$0x1]
        %v341 = vld [vmem:[%s206 + $0x4] sm:$0x1]
        %v342 = vld [vmem:[%s206 + $0x5] sm:$0x1]
        %v343 = vld [vmem:[%s206 + $0x6] sm:$0x1]
        %v344 = vld [vmem:[%s206 + $0x7] sm:$0x1]
        %v345 = vld [vmem:[%s206 + $0x8] sm:$0x1]
        %v346 = vld [vmem:[%s206 + $0x9] sm:$0x1]
        %v347 = vld [vmem:[%s206 + $0xa] sm:$0x1]
        %v348 = vld [vmem:[%s206 + $0xb] sm:$0x1]
        %v349 = vld [vmem:[%s206 + $0xc] sm:$0x1]
        %v350 = vld [vmem:[%s206 + $0xd] sm:$0x1]
        %v351 = vld [vmem:[%s206 + $0xe] sm:$0x1]
        %v352 = vld [vmem:[%s206 + $0xf] sm:$0x1]
        %v353 = vld [vmem:[%s206 + $0x10] sm:$0x1]
        %v354 = vld [vmem:[%s206 + $0x11] sm:$0x1]
        %v355 = vld [vmem:[%s206 + $0x12] sm:$0x1]
        %v356 = vld [vmem:[%s206 + $0x13] sm:$0x1]
        %v357 = vld [vmem:[%s206 + $0x14] sm:$0x1]
        %v358 = vld [vmem:[%s206 + $0x15] sm:$0x1]
        %v359 = vld [vmem:[%s206 + $0x16] sm:$0x1]
        %v360 = vld [vmem:[%s206 + $0x17] sm:$0x1]
        %v361 = vld [vmem:[%s206 + $0x18] sm:$0x1]
        %v362 = vld [vmem:[%s206 + $0x19] sm:$0x1]
        %v363 = vld [vmem:[%s206 + $0x1a] sm:$0x1]
        %v364 = vld [vmem:[%s206 + $0x1b] sm:$0x1]
        %v365 = vld [vmem:[%s206 + $0x1c] sm:$0x1]
        %v366 = vld [vmem:[%s206 + $0x1d] sm:$0x1]
        %v367 = vld [vmem:[%s206 + $0x1e] sm:$0x1]
        %v368 = vld [vmem:[%s206 + $0x1f] sm:$0x1]
        %v369 = vld [vmem:[%s206 + $0x20] sm:$0x1]
        %v370 = vld [vmem:[%s206 + $0x21] sm:$0x1]
        %v371 = vld [vmem:[%s206 + $0x22] sm:$0x1]
        %v372 = vld [vmem:[%s206 + $0x23] sm:$0x1]
        %v373 = vld [vmem:[%s206 + $0x24] sm:$0x1]
        %v374 = vld [vmem:[%s206 + $0x25] sm:$0x1]
        %v375 = vld [vmem:[%s206 + $0x26] sm:$0x1]
        %v376 = vld [vmem:[%s206 + $0x27] sm:$0x1]
        %v377 = vld [vmem:[%s206 + $0x28] sm:$0x1]
        %v378 = vld [vmem:[%s206 + $0x29] sm:$0x1]
        %v379 = vld [vmem:[%s206 + $0x2a] sm:$0x1]
        %v380 = vld [vmem:[%s206 + $0x2b] sm:$0x1]
        %v381 = vld [vmem:[%s206 + $0x2c] sm:$0x1]
        %v382 = vld [vmem:[%s206 + $0x2d] sm:$0x1]
        %v383 = vld [vmem:[%s206 + $0x2e] sm:$0x1]
        %v384 = vld [vmem:[%s206 + $0x2f] sm:$0x1]
        %v385 = vld [vmem:[%s206 + $0x30] sm:$0x1]
        %v386 = vld [vmem:[%s206 + $0x31] sm:$0x1]
        %v387 = vld [vmem:[%s206 + $0x32] sm:$0x1]
        %v388 = vld [vmem:[%s206 + $0x33] sm:$0x1]
        %v389 = vld [vmem:[%s206 + $0x34] sm:$0x1]
        %v390 = vld [vmem:[%s206 + $0x35] sm:$0x1]
        %v391 = vld [vmem:[%s206 + $0x36] sm:$0x1]
        %v392 = vld [vmem:[%s206 + $0x37] sm:$0x1]
        %v393 = vld [vmem:[%s206 + $0x38] sm:$0x1]
        %v394 = vld [vmem:[%s206 + $0x39] sm:$0x1]
        %v395 = vld [vmem:[%s206 + $0x3a] sm:$0x1]
        %v396 = vld [vmem:[%s206 + $0x3b] sm:$0x1]
        %v397 = vld [vmem:[%s206 + $0x3c] sm:$0x1]
        %v398 = vld [vmem:[%s206 + $0x3d] sm:$0x1]
        %v399 = vld [vmem:[%s206 + $0x3e] sm:$0x1]
        %v400 = vld [vmem:[%s206 + $0x3f] sm:$0x1]
        %401 = vst [vmem:[%s198] sm:$0x1] %v337
        %402 = vst [vmem:[%s198 + $0x1] sm:$0x1] %v338
        %403 = vst [vmem:[%s198 + $0x2] sm:$0x1] %v339
        %404 = vst [vmem:[%s198 + $0x3] sm:$0x1] %v340
        %405 = vst [vmem:[%s198 + $0x4] sm:$0x1] %v341
        %406 = vst [vmem:[%s198 + $0x5] sm:$0x1] %v342
        %407 = vst [vmem:[%s198 + $0x6] sm:$0x1] %v343
        %408 = vst [vmem:[%s198 + $0x7] sm:$0x1] %v344
        %409 = vst [vmem:[%s198 + $0x8] sm:$0x1] %v345
        %410 = vst [vmem:[%s198 + $0x9] sm:$0x1] %v346
        %411 = vst [vmem:[%s198 + $0xa] sm:$0x1] %v347
        %412 = vst [vmem:[%s198 + $0xb] sm:$0x1] %v348
        %413 = vst [vmem:[%s198 + $0xc] sm:$0x1] %v349
        %414 = vst [vmem:[%s198 + $0xd] sm:$0x1] %v350
        %415 = vst [vmem:[%s198 + $0xe] sm:$0x1] %v351
        %416 = vst [vmem:[%s198 + $0xf] sm:$0x1] %v352
        %417 = vst [vmem:[%s198 + $0x10] sm:$0x1] %v353
        %418 = vst [vmem:[%s198 + $0x11] sm:$0x1] %v354
        %419 = vst [vmem:[%s198 + $0x12] sm:$0x1] %v355
        %420 = vst [vmem:[%s198 + $0x13] sm:$0x1] %v356
        %421 = vst [vmem:[%s198 + $0x14] sm:$0x1] %v357
        %422 = vst [vmem:[%s198 + $0x15] sm:$0x1] %v358
        %423 = vst [vmem:[%s198 + $0x16] sm:$0x1] %v359
        %424 = vst [vmem:[%s198 + $0x17] sm:$0x1] %v360
        %425 = vst [vmem:[%s198 + $0x18] sm:$0x1] %v361
        %426 = vst [vmem:[%s198 + $0x19] sm:$0x1] %v362
        %427 = vst [vmem:[%s198 + $0x1a] sm:$0x1] %v363
        %428 = vst [vmem:[%s198 + $0x1b] sm:$0x1] %v364
        %429 = vst [vmem:[%s198 + $0x1c] sm:$0x1] %v365
        %430 = vst [vmem:[%s198 + $0x1d] sm:$0x1] %v366
        %431 = vst [vmem:[%s198 + $0x1e] sm:$0x1] %v367
        %432 = vst [vmem:[%s198 + $0x1f] sm:$0x1] %v368
        %433 = vst [vmem:[%s198 + $0x20] sm:$0x1] %v369
        %434 = vst [vmem:[%s198 + $0x21] sm:$0x1] %v370
        %435 = vst [vmem:[%s198 + $0x22] sm:$0x1] %v371
        %436 = vst [vmem:[%s198 + $0x23] sm:$0x1] %v372
        %437 = vst [vmem:[%s198 + $0x24] sm:$0x1] %v373
        %438 = vst [vmem:[%s198 + $0x25] sm:$0x1] %v374
        %439 = vst [vmem:[%s198 + $0x26] sm:$0x1] %v375
        %440 = vst [vmem:[%s198 + $0x27] sm:$0x1] %v376
        %441 = vst [vmem:[%s198 + $0x28] sm:$0x1] %v377
        %442 = vst [vmem:[%s198 + $0x29] sm:$0x1] %v378
        %443 = vst [vmem:[%s198 + $0x2a] sm:$0x1] %v379
        %444 = vst [vmem:[%s198 + $0x2b] sm:$0x1] %v380
        %445 = vst [vmem:[%s198 + $0x2c] sm:$0x1] %v381
        %446 = vst [vmem:[%s198 + $0x2d] sm:$0x1] %v382
        %447 = vst [vmem:[%s198 + $0x2e] sm:$0x1] %v383
        %448 = vst [vmem:[%s198 + $0x2f] sm:$0x1] %v384
        %449 = vst [vmem:[%s198 + $0x30] sm:$0x1] %v385
        %450 = vst [vmem:[%s198 + $0x31] sm:$0x1] %v386
        %451 = vst [vmem:[%s198 + $0x32] sm:$0x1] %v387
        %452 = vst [vmem:[%s198 + $0x33] sm:$0x1] %v388
        %453 = vst [vmem:[%s198 + $0x34] sm:$0x1] %v389
        %454 = vst [vmem:[%s198 + $0x35] sm:$0x1] %v390
        %455 = vst [vmem:[%s198 + $0x36] sm:$0x1] %v391
        %456 = vst [vmem:[%s198 + $0x37] sm:$0x1] %v392
        %457 = vst [vmem:[%s198 + $0x38] sm:$0x1] %v393
        %458 = vst [vmem:[%s198 + $0x39] sm:$0x1] %v394
        %459 = vst [vmem:[%s198 + $0x3a] sm:$0x1] %v395
        %460 = vst [vmem:[%s198 + $0x3b] sm:$0x1] %v396
        %461 = vst [vmem:[%s198 + $0x3c] sm:$0x1] %v397
        %462 = vst [vmem:[%s198 + $0x3d] sm:$0x1] %v398
        %463 = vst [vmem:[%s198 + $0x3e] sm:$0x1] %v399
        %464 = vst [vmem:[%s198 + $0x3f] sm:$0x1] %v400
        %s465 = sand.u32 %s92, 1
        %s466 = scalar_lea.sflag [#allocation5], %s465
        %s467 = sand.u32 %s92, 1
        %s468 = smul.addr %s467, 64
        %s469 = scalar_lea.vmem [#allocation4], %s468
        %s470 = sand.u32 %s120, 1
        %s471 = scalar_lea.sflag [#allocation7], %s470
        %s472 = sand.u32 %s120, 1
        %s473 = smul.addr %s472, 64
        %s474 = scalar_lea.vmem [#allocation6], %s473
        // Predicated region
        $region29: #{tpu_custom_call.1} parent=27 // pred_check
          %p475 = pneg %p102
        $region30: #{tpu_custom_call.1} parent=27 // pred_check_branch
          %477 = sbr.rel (%p475) target = $region32
        $region31: #{tpu_custom_call.1} parent=27 // pred_region
          %s478 = sld [smem:[#allocation3 + %s30]]
          %s480 = ssub.s32 1024, 1024
          %481 = vsyncadd %s466, %s480
          %s482 = smul.addr %s478, 64
          %s483 = smul.addr %s482, 16
          %s484 = scalar_lea.hbm %s5, %s483
          %s485 = sshll.u32 %s469, 4
          %s486 = int_to_ptr.vmem [resolvable:$true] %s485
          %491 = dma.vmem_to_hbm [thread:$0]  %s486, 1024, %s484, %s466, 16, 16, 1
        $region32: #{tpu_custom_call.1} parent=27 // pred_fallthru
          _
        // Predicated region
        $region33: #{tpu_custom_call.1} parent=27 // pred_check
          %p492 = pneg %p130
        $region34: #{tpu_custom_call.1} parent=27 // pred_check_branch
          %494 = sbr.rel (%p492) target = $region36
        $region35: #{tpu_custom_call.1} parent=27 // pred_region
          %s495 = sld [smem:[#allocation3 + %s30]]
          %s497 = ssub.s32 1024, 1024
          %498 = vsyncadd %s471, %s497
          %s499 = smul.addr %s495, 64
          %s500 = smul.addr %s499, 16
          %s501 = scalar_lea.hbm %s6, %s500
          %s502 = sshll.u32 %s474, 4
          %s503 = int_to_ptr.vmem [resolvable:$true] %s502
          %508 = dma.vmem_to_hbm [thread:$0]  %s503, 1024, %s501, %s471, 16, 16, 1
        $region36: #{tpu_custom_call.1} parent=27 // pred_fallthru
          _
      $region28: #{tpu_custom_call.1} parent=5 // pred_fallthru
        _
      %p509 = scmp.le.s32.totalorder 2, %s25
      // Predicated region
      $region37: #{tpu_custom_call.1} parent=5 // pred_check
        %p510 = pneg %p509
      $region38: #{tpu_custom_call.1} parent=5 // pred_check_branch
        %512 = sbr.rel (%p510) target = $region40
      $region39: #{tpu_custom_call.1} parent=5 // pred_region
        %s513 = ssub.s32 %s25, 2
        // Predicated region
        $region41: #{tpu_custom_call.1} parent=39 // pred_check
          %p514 = pneg %p108
        $region42: #{tpu_custom_call.1} parent=39 // pred_check_branch
          %516 = sbr.rel (%p514) target = $region44
        $region43: #{tpu_custom_call.1} parent=39 // pred_region
          %s517 = sand.u32 %s93, 1
          %s518 = scalar_lea.sflag [#allocation5], %s517
          %s519 = sand.u32 %s93, 1
          %s520 = smul.addr %s519, 64
          %s521 = scalar_lea.vmem [#allocation4], %s520
          %522 = dma.done %s518, 1024
        $region44: #{tpu_custom_call.1} parent=39 // pred_fallthru
          _
        // Predicated region
        $region45: #{tpu_custom_call.1} parent=39 // pred_check
          %p523 = pneg %p136
        $region46: #{tpu_custom_call.1} parent=39 // pred_check_branch
          %525 = sbr.rel (%p523) target = $region48
        $region47: #{tpu_custom_call.1} parent=39 // pred_region
          %s526 = sand.u32 %s121, 1
          %s527 = scalar_lea.sflag [#allocation7], %s526
          %s528 = sand.u32 %s121, 1
          %s529 = smul.addr %s528, 64
          %s530 = scalar_lea.vmem [#allocation6], %s529
          %531 = dma.done %s527, 1024
        $region48: #{tpu_custom_call.1} parent=39 // pred_fallthru
          _
      $region40: #{tpu_custom_call.1} parent=5 // pred_fallthru
        _
    $region6: #{tpu_custom_call.1} parent=1 // loop_footer
      %s29 = sadd.s32 1, %s25
    $region7: #{tpu_custom_call.1} parent=1 // loop_footer_branch
      %24 = sbr.rel target = $region3
    $region8: #{tpu_custom_call.1} parent=1 // loop_exit
      _
    %532 = vsyncpa [#allocation5], 1
    %s533 = scalar_lea.sflag [#allocation5], 1
    %534 = vsyncpa %s533, 1
    %535 = vsyncpa [#allocation7], 1
    %s536 = scalar_lea.sflag [#allocation7], 1
    %537 = vsyncpa %s536, 1

</llo_original>
